<compile_context>
chip_gen: v7x
topology: tpu7x:2x2x1
jax: 0.10.0
libtpu: 0.0.40
codegen_flags: <defaults>
</compile_context>

<pallas_src>
import functools

import jax
import jax.numpy as jnp
import numpy as np
from jax import lax
from jax.experimental import pallas as pl
from jax.experimental.pallas import tpu as pltpu


# ----------------------------- kernel -------------------------------------- #

def _prenorm_kernel(x_ref, g_ref, b_ref, w_ref, wb_ref, o_ref, *,
                    eps, small_c, mxu_bf16):
    # x_ref: (nb, C, T) tile — channels on sublanes, spatial pixels on lanes.
    x = x_ref[...].astype(jnp.float32)
    nb, C, _ = x.shape

    # Two-pass channel statistics (unbiased=False). The second pass is free in
    # the DMA-bound regime and avoids E[x^2]-mean^2 cancellation.
    mean = jnp.mean(x, axis=1, keepdims=True)            # (nb, 1, T)
    xc = x - mean
    var = jnp.mean(xc * xc, axis=1, keepdims=True)       # (nb, 1, T)
    std = jnp.sqrt(var)
    inv = pl.reciprocal(std + eps, approx=False)         # exact; hides under DMA

    g = g_ref[...].astype(jnp.float32).reshape(1, C, 1)
    b = b_ref[...].astype(jnp.float32).reshape(1, C, 1)
    y = xc * inv * g + b                                  # (nb, C, T)

    wb = wb_ref[...].astype(jnp.float32).reshape(1, C, 1)

    if small_c:
        # Tiny-C 1x1 conv on the VPU: C unrolled broadcast multiply-adds
        # (a CxC=4x4 matmul would waste the MXU).
        w = w_ref[...].astype(jnp.float32)                # (C_out, C_in)
        out = wb
        for ci in range(C):
            out = out + w[:, ci:ci + 1].reshape(1, C, 1) * y[:, ci:ci + 1, :]
        o_ref[...] = out.astype(o_ref.dtype)
    else:
        # Production-sized C: lane-dense MXU matmul per batch slice, spatial
        # axis = MXU N dim, bf16 inputs + fp32 accumulation (MXU is bf16-native).
        w = w_ref[...]
        if mxu_bf16:
            w = w.astype(jnp.bfloat16)
            y = y.astype(jnp.bfloat16)
        for i in range(nb):                               # nb is small & static
            oi = lax.dot_general(w, y[i],
                                 dimension_numbers=(((1,), (0,)), ((), ())),
                                 preferred_element_type=jnp.float32)
            o_ref[i] = (oi + wb[0]).astype(o_ref.dtype)


# --------------------------- tiling helpers --------------------------------- #

def _round_up(a, m):
    return (a + m - 1) // m * m


def _cdiv(a, b):
    return (a + b - 1) // b


def _halve_lane(lt):
    """Halve a lane tile, staying a legal (multiple-of-128) block dim."""
    if lt <= 128:
        return lt
    return max(128, (lt // 2) // 128 * 128)


def _vmem_physical_bytes():
    try:
        info = pltpu.get_tpu_info()
        for attr in ("vmem_capacity_bytes", "vmem_size_bytes", "vmem_bytes"):
            v = getattr(info, attr, None)
            if v:
                return int(v)
    except Exception:
        pass
    return 64 << 20  # conservative (v7x-sized) fallback, safe on all gens


# ------------------------------ wrapper ------------------------------------- #

def prenorm_pallas(x_nchw, g, b, conv_w, conv_b, *, eps=1e-5):
    """x_nchw: (N, C, H, W). g, b: (1, C, 1, 1). conv_w: (C, C, 1, 1). conv_b: (C,)."""
    N, C, H, W = x_nchw.shape
    dtype = x_nchw.dtype
    HW = H * W
    itemsize = jnp.dtype(dtype).itemsize

    # (N, C, H, W) -> (N, C, H*W): contiguous reshape, no HBM transpose pass.
    x3 = x_nchw.reshape(N, C, HW)

    small_c = C <= 8            # VPU path only for truly tiny C; MXU otherwise
    mxu_bf16 = not small_c

    # --- generation-aware budgets -------------------------------------------
    vmem_phys = _vmem_physical_bytes()
    vmem_budget = min(vmem_phys * 3 // 4, 100 << 20)   # ~96 MiB v5e/v6e, ~48 MiB v7x
    target_bytes = (4 << 20) if vmem_phys <= (64 << 20) else (2 << 20)

    # --- spatial (lane) tile sized by bytes ----------------------------------
    want_lanes = max(128, _cdiv(target_bytes, max(1, C * itemsize)))
    if want_lanes >= HW:
        lane_tile = HW                                   # full-extent block (legal)
    else:
        lane_tile = max(128, (want_lanes // 128) * 128)  # multiple of 128, ragged ok

    # --- block over N when per-image spatial slab is still small -------------
    nb = 1
    tile_bytes = C * lane_tile * itemsize
    if lane_tile == HW and tile_bytes < target_bytes and N > 1:
        nb = min(N, max(1, target_bytes // max(1, tile_bytes)))

    # --- VMEM accounting (incl. fp32 intermediates + layout padding) ---------
    Cp = _round_up(C, 8)

    def _vmem_need(nb_, lt_):
        ltp = lt_ if lt_ % 128 == 0 else _round_up(lt_, 128)
        blk = nb_ * Cp * ltp
        pipe = 2 * 2 * blk * itemsize        # double-buffered in + out blocks
        interm = 4 * blk * 4                 # fp32 temporaries (x, xc, y, out)
        params = (3 * Cp + Cp * Cp) * 4
        return pipe + interm + params

    while _vmem_need(nb, lane_tile) > vmem_budget:
        if nb > 1:
            nb //= 2
            continue
        new_lt = _halve_lane(lane_tile)
        if new_lt < lane_tile:
            lane_tile = new_lt
            continue
        break  # smallest legal tile; let the compiler have it

    # --- keep >= 4 grid steps when there is enough data (v7x: 2 TCs) ---------
    min_step_bytes = 512 << 10
    while _cdiv(N, nb) * _cdiv(HW, lane_tile) < 4:
        if nb > 1 and (nb // 2) * C * lane_tile * itemsize >= min_step_bytes:
            nb //= 2
            continue
        new_lt = _halve_lane(lane_tile)
        if new_lt < lane_tile and nb * C * new_lt * itemsize >= min_step_bytes:
            lane_tile = new_lt
            continue
        break

    grid = (_cdiv(N, nb), _cdiv(HW, lane_tile))

    # --- params: f32 for the VPU path, bf16 weight for the MXU path ----------
    g2 = g.reshape(C, 1).astype(jnp.float32)
    b2 = b.reshape(C, 1).astype(jnp.float32)
    w2 = conv_w.reshape(C, C).astype(jnp.bfloat16 if mxu_bf16 else jnp.float32)
    wb2 = conv_b.reshape(C, 1).astype(jnp.float32)

    kernel = functools.partial(_prenorm_kernel, eps=eps,
                               small_c=small_c, mxu_bf16=mxu_bf16)

    need = _vmem_need(nb, lane_tile)
    vmem_limit = int(min(vmem_budget, max(2 * need, 16 << 20)))

    out3 = pl.pallas_call(
        kernel,
        out_shape=jax.ShapeDtypeStruct((N, C, HW), dtype),
        grid=grid,
        in_specs=[
            pl.BlockSpec((nb, C, lane_tile), lambda n, t: (n, 0, t)),  # x tile
            pl.BlockSpec((C, 1), lambda n, t: (0, 0)),                 # g
            pl.BlockSpec((C, 1), lambda n, t: (0, 0)),                 # b
            pl.BlockSpec((C, C), lambda n, t: (0, 0)),                 # conv weight
            pl.BlockSpec((C, 1), lambda n, t: (0, 0)),                 # conv bias
        ],
        out_specs=pl.BlockSpec((nb, C, lane_tile), lambda n, t: (n, 0, t)),
        compiler_params=pltpu.CompilerParams(
            dimension_semantics=("parallel", "parallel"),
            vmem_limit_bytes=vmem_limit,
        ),
    )(x3, g2, b2, w2, wb2)

    return out3.reshape(N, C, H, W)


# ----------------------------- reference ------------------------------------ #

def prenorm_reference(x, g, b, conv_w, conv_b, eps=1e-5):
    """Pure-JAX reference mirroring the PyTorch module semantics (NCHW)."""
    xf = x.astype(jnp.float32)
    mean = jnp.mean(xf, axis=1, keepdims=True)
    var = jnp.mean((xf - mean) ** 2, axis=1, keepdims=True)
    std = jnp.sqrt(var)
    y = (xf - mean) / (std + eps) * g.astype(jnp.float32) + b.astype(jnp.float32)
    w = conv_w.reshape(conv_w.shape[0], conv_w.shape[1]).astype(jnp.float32)
    out = jnp.einsum("nchw,oc->nohw", y, w) + conv_b.astype(jnp.float32)[None, :, None, None]
    return out.astype(x.dtype)


if __name__ == "__main__":
    key = jax.random.PRNGKey(0)
    N, C, H, W = 2, 4, 16, 16

    k_x, k_w, k_b, k_g, k_gb = jax.random.split(key, 5)
    x = jax.random.normal(k_x, (N, C, H, W), dtype=jnp.float32)

    # ChanNorm parameters (PyTorch init: g = ones, b = zeros) — perturbed
    # deterministically so the affine path is exercised.
    g = jnp.ones((1, C, 1, 1), jnp.float32) + 0.1 * jax.random.normal(k_g, (1, C, 1, 1))
    b_par = jnp.zeros((1, C, 1, 1), jnp.float32) + 0.1 * jax.random.normal(k_gb, (1, C, 1, 1))

    # fn = Conv2d(C, C, kernel_size=1) with deterministic weights.
    conv_w = 0.5 * jax.random.normal(k_w, (C, C, 1, 1), dtype=jnp.float32)
    conv_b = 0.1 * jax.random.normal(k_b, (C,), dtype=jnp.float32)

    out = prenorm_pallas(x, g, b_par, conv_w, conv_b)
    out = jax.block_until_ready(out)

    ref = prenorm_reference(x, g, b_par, conv_w, conv_b)
    # Exact reciprocal + two-pass variance + f32 VPU conv at small C: tight tolerance.
    np.testing.assert_allclose(np.asarray(out), np.asarray(ref), rtol=1e-4, atol=1e-4)

    print("KERNEL_OK")
</pallas_src>

<mosaic_0001>
module attributes {stable_mosaic.version = 11 : i64} {
  func.func @_prenorm_kernel(%arg0: i32, %arg1: i32, %arg2: memref<2x4x256xf32, #tpu.memory_space<vmem>>, %arg3: memref<4x1xf32, #tpu.memory_space<vmem>>, %arg4: memref<4x1xf32, #tpu.memory_space<vmem>>, %arg5: memref<4x4xf32, #tpu.memory_space<vmem>>, %arg6: memref<4x1xf32, #tpu.memory_space<vmem>>, %arg7: memref<2x4x256xf32, #tpu.memory_space<vmem>>) attributes {dimension_semantics = [#tpu.dimension_semantics<parallel>, #tpu.dimension_semantics<parallel>], iteration_bounds = array<i64: 1, 1>, scalar_prefetch = 0 : i64, scratch_operands = 0 : i64, tpu.core_type = #tpu.core_type<tc>, window_params = [{transform_indices = @transform_0, window_bounds = array<i64: 2, 4, 256>}, {pipeline_mode = #tpu.pipeline_mode<synchronous>, transform_indices = @transform_1, window_bounds = array<i64: 4, 1>}, {pipeline_mode = #tpu.pipeline_mode<synchronous>, transform_indices = @transform_2, window_bounds = array<i64: 4, 1>}, {pipeline_mode = #tpu.pipeline_mode<synchronous>, transform_indices = @transform_3, window_bounds = array<i64: 4, 4>}, {pipeline_mode = #tpu.pipeline_mode<synchronous>, transform_indices = @transform_4, window_bounds = array<i64: 4, 1>}, {transform_indices = @transform_5, window_bounds = array<i64: 2, 4, 256>}]} {
    %c0 = arith.constant 0 : index
    %c0_0 = arith.constant 0 : index
    %c0_1 = arith.constant 0 : index
    %0 = vector.load %arg2[%c0, %c0_0, %c0_1] : memref<2x4x256xf32, #tpu.memory_space<vmem>>, vector<2x4x256xf32>
    %cst = arith.constant dense<0.000000e+00> : vector<2x256xf32>
    %1 = vector.multi_reduction <add>, %0, %cst [1] : vector<2x4x256xf32> to vector<2x256xf32>
    %2 = vector.shape_cast %1 : vector<2x256xf32> to vector<2x1x256xf32>
    %cst_2 = arith.constant 4.000000e+00 : f32
    %3 = vector.broadcast %cst_2 : f32 to vector<2x1x256xf32>
    %4 = arith.divf %2, %3 : vector<2x1x256xf32>
    %5 = vector.broadcast %4 : vector<2x1x256xf32> to vector<2x4x256xf32>
    %6 = arith.subf %0, %5 : vector<2x4x256xf32>
    %7 = arith.mulf %6, %6 : vector<2x4x256xf32>
    %cst_3 = arith.constant dense<0.000000e+00> : vector<2x256xf32>
    %8 = vector.multi_reduction <add>, %7, %cst_3 [1] : vector<2x4x256xf32> to vector<2x256xf32>
    %9 = vector.shape_cast %8 : vector<2x256xf32> to vector<2x1x256xf32>
    %cst_4 = arith.constant 4.000000e+00 : f32
    %10 = vector.broadcast %cst_4 : f32 to vector<2x1x256xf32>
    %11 = arith.divf %9, %10 : vector<2x1x256xf32>
    %12 = math.sqrt %11 : vector<2x1x256xf32>
    %cst_5 = arith.constant 9.99999974E-6 : f32
    %13 = vector.broadcast %cst_5 : f32 to vector<2x1x256xf32>
    %14 = arith.addf %12, %13 : vector<2x1x256xf32>
    %15 = tpu.reciprocal %14 : vector<2x1x256xf32> -> vector<2x1x256xf32>
    %c0_6 = arith.constant 0 : index
    %c0_7 = arith.constant 0 : index
    %16 = vector.load %arg3[%c0_6, %c0_7] : memref<4x1xf32, #tpu.memory_space<vmem>>, vector<4x1xf32>
    %17 = vector.shape_cast %16 : vector<4x1xf32> to vector<1x4x1xf32>
    %c0_8 = arith.constant 0 : index
    %c0_9 = arith.constant 0 : index
    %18 = vector.load %arg4[%c0_8, %c0_9] : memref<4x1xf32, #tpu.memory_space<vmem>>, vector<4x1xf32>
    %19 = vector.shape_cast %18 : vector<4x1xf32> to vector<1x4x1xf32>
    %20 = vector.broadcast %15 : vector<2x1x256xf32> to vector<2x4x256xf32>
    %21 = arith.mulf %6, %20 : vector<2x4x256xf32>
    %22 = vector.broadcast %17 : vector<1x4x1xf32> to vector<2x4x256xf32>
    %23 = arith.mulf %21, %22 : vector<2x4x256xf32>
    %24 = vector.broadcast %19 : vector<1x4x1xf32> to vector<2x4x256xf32>
    %25 = arith.addf %23, %24 : vector<2x4x256xf32>
    %c0_10 = arith.constant 0 : index
    %c0_11 = arith.constant 0 : index
    %26 = vector.load %arg6[%c0_10, %c0_11] : memref<4x1xf32, #tpu.memory_space<vmem>>, vector<4x1xf32>
    %27 = vector.shape_cast %26 : vector<4x1xf32> to vector<1x4x1xf32>
    %c0_12 = arith.constant 0 : index
    %c0_13 = arith.constant 0 : index
    %28 = vector.load %arg5[%c0_12, %c0_13] : memref<4x4xf32, #tpu.memory_space<vmem>>, vector<4x4xf32>
    %29 = vector.extract_strided_slice %28 {offsets = [0, 0], sizes = [4, 1], strides = [1, 1]} : vector<4x4xf32> to vector<4x1xf32>
    %30 = vector.shape_cast %29 : vector<4x1xf32> to vector<1x4x1xf32>
    %31 = vector.extract_strided_slice %25 {offsets = [0, 0, 0], sizes = [2, 1, 256], strides = [1, 1, 1]} : vector<2x4x256xf32> to vector<2x1x256xf32>
    %32 = vector.broadcast %30 : vector<1x4x1xf32> to vector<2x4x256xf32>
    %33 = vector.broadcast %31 : vector<2x1x256xf32> to vector<2x4x256xf32>
    %34 = arith.mulf %32, %33 : vector<2x4x256xf32>
    %35 = vector.broadcast %27 : vector<1x4x1xf32> to vector<2x4x256xf32>
    %36 = arith.addf %35, %34 : vector<2x4x256xf32>
    %37 = vector.extract_strided_slice %28 {offsets = [0, 1], sizes = [4, 1], strides = [1, 1]} : vector<4x4xf32> to vector<4x1xf32>
    %38 = vector.shape_cast %37 : vector<4x1xf32> to vector<1x4x1xf32>
    %39 = vector.extract_strided_slice %25 {offsets = [0, 1, 0], sizes = [2, 1, 256], strides = [1, 1, 1]} : vector<2x4x256xf32> to vector<2x1x256xf32>
    %40 = vector.broadcast %38 : vector<1x4x1xf32> to vector<2x4x256xf32>
    %41 = vector.broadcast %39 : vector<2x1x256xf32> to vector<2x4x256xf32>
    %42 = arith.mulf %40, %41 : vector<2x4x256xf32>
    %43 = arith.addf %36, %42 : vector<2x4x256xf32>
    %44 = vector.extract_strided_slice %28 {offsets = [0, 2], sizes = [4, 1], strides = [1, 1]} : vector<4x4xf32> to vector<4x1xf32>
    %45 = vector.shape_cast %44 : vector<4x1xf32> to vector<1x4x1xf32>
    %46 = vector.extract_strided_slice %25 {offsets = [0, 2, 0], sizes = [2, 1, 256], strides = [1, 1, 1]} : vector<2x4x256xf32> to vector<2x1x256xf32>
    %47 = vector.broadcast %45 : vector<1x4x1xf32> to vector<2x4x256xf32>
    %48 = vector.broadcast %46 : vector<2x1x256xf32> to vector<2x4x256xf32>
    %49 = arith.mulf %47, %48 : vector<2x4x256xf32>
    %50 = arith.addf %43, %49 : vector<2x4x256xf32>
    %51 = vector.extract_strided_slice %28 {offsets = [0, 3], sizes = [4, 1], strides = [1, 1]} : vector<4x4xf32> to vector<4x1xf32>
    %52 = vector.shape_cast %51 : vector<4x1xf32> to vector<1x4x1xf32>
    %53 = vector.extract_strided_slice %25 {offsets = [0, 3, 0], sizes = [2, 1, 256], strides = [1, 1, 1]} : vector<2x4x256xf32> to vector<2x1x256xf32>
    %54 = vector.broadcast %52 : vector<1x4x1xf32> to vector<2x4x256xf32>
    %55 = vector.broadcast %53 : vector<2x1x256xf32> to vector<2x4x256xf32>
    %56 = arith.mulf %54, %55 : vector<2x4x256xf32>
    %57 = arith.addf %50, %56 : vector<2x4x256xf32>
    %c0_14 = arith.constant 0 : index
    %c0_15 = arith.constant 0 : index
    %c0_16 = arith.constant 0 : index
    %58 = vector.load %arg7[%c0_14, %c0_15, %c0_16] : memref<2x4x256xf32, #tpu.memory_space<vmem>>, vector<2x4x256xf32>
    tpu.vector_store %arg7[%c0_14, %c0_15, %c0_16], %57 {strides = array<i32>} : memref<2x4x256xf32, #tpu.memory_space<vmem>>, vector<2x4x256xf32>,
    return
  }
  func.func @transform_0(%arg0: i32, %arg1: i32) -> (i32, i32, i32) {
    %c0_i32 = arith.constant 0 : i32
    %c0_i32_0 = arith.constant 0 : i32
    return %arg0, %c0_i32, %arg1 : i32, i32, i32
  }
  func.func @transform_1(%arg0: i32, %arg1: i32) -> (i32, i32) {
    %c0_i32 = arith.constant 0 : i32
    %c0_i32_0 = arith.constant 0 : i32
    %c0_i32_1 = arith.constant 0 : i32
    return %c0_i32, %c0_i32_0 : i32, i32
  }
  func.func @transform_2(%arg0: i32, %arg1: i32) -> (i32, i32) {
    %c0_i32 = arith.constant 0 : i32
    %c0_i32_0 = arith.constant 0 : i32
    %c0_i32_1 = arith.constant 0 : i32
    return %c0_i32, %c0_i32_0 : i32, i32
  }
  func.func @transform_3(%arg0: i32, %arg1: i32) -> (i32, i32) {
    %c0_i32 = arith.constant 0 : i32
    %c0_i32_0 = arith.constant 0 : i32
    %c0_i32_1 = arith.constant 0 : i32
    return %c0_i32, %c0_i32_0 : i32, i32
  }
  func.func @transform_4(%arg0: i32, %arg1: i32) -> (i32, i32) {
    %c0_i32 = arith.constant 0 : i32
    %c0_i32_0 = arith.constant 0 : i32
    %c0_i32_1 = arith.constant 0 : i32
    return %c0_i32, %c0_i32_0 : i32, i32
  }
  func.func @transform_5(%arg0: i32, %arg1: i32) -> (i32, i32, i32) {
    %c0_i32 = arith.constant 0 : i32
    %c0_i32_0 = arith.constant 0 : i32
    return %arg0, %c0_i32, %arg1 : i32, i32, i32
  }
}

</mosaic_0001>

<llo_original>
// kernel: tpu_custom_call.1
$region0: #{tpu_custom_call.1}
  #allocation0 [shape = 'u32[]', space=smem, size = 0x4, offset = 0x4, fixed_abs, tag = 'smem constant byte address 0x4 - core index']
  #allocation1 [shape = 'u32[144,128]{1,0:T(1,128)}', space=vmem, size = 0x12000, scoped, tag = 'internal scratch']
  %s0 = inlined_call_operand.hbm [shape: f32[2,4,256], index: 0, kind: input, shape index: {}]
  %s1 = inlined_call_operand.vmem [shape: f32[4,1], index: 1, kind: input, shape index: {}]
  %s2 = inlined_call_operand.vmem [shape: f32[4,1], index: 2, kind: input, shape index: {}]
  %s3 = inlined_call_operand.vmem [shape: f32[4,4], index: 3, kind: input, shape index: {}]
  %s4 = inlined_call_operand.vmem [shape: f32[4,1], index: 4, kind: input, shape index: {}]
  %s5 = inlined_call_operand.hbm [shape: f32[2,4,256], index: 5, kind: output, shape index: {}]
  %s6 = sld [smem:[#allocation0]]
  $region34: #{tpu_custom_call.1} parent=0
    _
  %s8 = ssub.s32 1, %s6
  %s9 = scalar_select 0, %s8, %s6
  $region1: #{tpu_custom_call.1} parent=0
    #allocation2 [shape = 'u8[8192]{0}', space=vmem, size = 0x2000, scoped, tag = 'input window, operand 0, single buffered']
    #allocation3 [shape = 's32[1]{0}', space=sflag, size = 0x4, scoped, tag = 'scoped memory for tpu_custom_call.1']
    #allocation4 [shape = 's32[1]{0}', space=sflag, size = 0x4, scoped, tag = 'scoped memory for tpu_custom_call.1']
    #allocation5 [shape = 'u8[8192]{0}', space=vmem, size = 0x2000, scoped, tag = 'output window, operand 0, single buffered']
    %10 = vsyncpa [#allocation3], 0
    %11 = vsyncpa [#allocation4], 0
    // Predicated region
    $region2: #{tpu_custom_call.1} parent=1 // pred_check
      _
    $region3: #{tpu_custom_call.1} parent=1 // pred_check_branch
      %13 = sbr.rel (0) target = $region5
    $region4: #{tpu_custom_call.1} parent=1 // pred_region
      %s15 = ssub.s32 256, 256
      %16 = vsyncadd [#allocation3], %s15
      %s17 = sshll.u32 [#allocation2], 4
      %s18 = int_to_ptr.vmem [resolvable:$true] %s17
      %23 = dma.hbm_to_vmem [thread:$0]  %s0, 256, %s18, [#allocation3], 128, 128, 8
    $region5: #{tpu_custom_call.1} parent=1 // pred_fallthru
      _
    // Predicated region
    $region6: #{tpu_custom_call.1} parent=1 // pred_check
      _
    $region7: #{tpu_custom_call.1} parent=1 // pred_check_branch
      %25 = sbr.rel (0) target = $region9
    $region8: #{tpu_custom_call.1} parent=1 // pred_region
      _
    $region9: #{tpu_custom_call.1} parent=1 // pred_fallthru
      _
    // Predicated region
    $region10: #{tpu_custom_call.1} parent=1 // pred_check
      _
    $region11: #{tpu_custom_call.1} parent=1 // pred_check_branch
      %27 = sbr.rel (0) target = $region13
    $region12: #{tpu_custom_call.1} parent=1 // pred_region
      _
    $region13: #{tpu_custom_call.1} parent=1 // pred_fallthru
      _
    // Predicated region
    $region14: #{tpu_custom_call.1} parent=1 // pred_check
      _
    $region15: #{tpu_custom_call.1} parent=1 // pred_check_branch
      %29 = sbr.rel (0) target = $region17
    $region16: #{tpu_custom_call.1} parent=1 // pred_region
      _
    $region17: #{tpu_custom_call.1} parent=1 // pred_fallthru
      _
    // Predicated region
    $region18: #{tpu_custom_call.1} parent=1 // pred_check
      _
    $region19: #{tpu_custom_call.1} parent=1 // pred_check_branch
      %31 = sbr.rel (0) target = $region21
    $region20: #{tpu_custom_call.1} parent=1 // pred_region
      _
    $region21: #{tpu_custom_call.1} parent=1 // pred_fallthru
      _
    // Predicated region
    $region22: #{tpu_custom_call.1} parent=1 // pred_check
      _
    $region23: #{tpu_custom_call.1} parent=1 // pred_check_branch
      %33 = sbr.rel (0) target = $region25
    $region24: #{tpu_custom_call.1} parent=1 // pred_region
      %34 = dma.done [#allocation3], 256
    $region25: #{tpu_custom_call.1} parent=1 // pred_fallthru
      _
    %v35 = vld [vmem:[#allocation2] sm:$0xff]
    %v36 = vld [vmem:[#allocation2 + $0x8] sm:$0xff]
    %v39 = vcombine.high %v35, %v35
    %v40 = vcombine.high %v36, %v36
    %vm43 = vcmask 1043456
    %v44 = vsel %vm43, %v35, 0.0
    %v45 = vrot.slane %v44, 4
    %v46 = vadd.f32 %v44, %v45
    %v47 = vrot.slane %v46, 2
    %v48 = vadd.f32 %v46, %v47
    %v49 = vrot.slane %v48, 1
    %v50 = vadd.f32 %v48, %v49
    %v51 = vsel %vm43, %v39, 0.0
    %v52 = vrot.slane %v51, 4
    %v53 = vadd.f32 %v51, %v52
    %v54 = vrot.slane %v53, 2
    %v55 = vadd.f32 %v53, %v54
    %v56 = vrot.slane %v55, 1
    %v57 = vadd.f32 %v55, %v56
    %v58 = vsel %vm43, %v36, 0.0
    %v59 = vrot.slane %v58, 4
    %v60 = vadd.f32 %v58, %v59
    %v61 = vrot.slane %v60, 2
    %v62 = vadd.f32 %v60, %v61
    %v63 = vrot.slane %v62, 1
    %v64 = vadd.f32 %v62, %v63
    %v65 = vsel %vm43, %v40, 0.0
    %v66 = vrot.slane %v65, 4
    %v67 = vadd.f32 %v65, %v66
    %v68 = vrot.slane %v67, 2
    %v69 = vadd.f32 %v67, %v68
    %v70 = vrot.slane %v69, 1
    %v71 = vadd.f32 %v69, %v70
    %v72 = vrcp.pop 4.0
    %v73 = vmul.f32 %v50, %v72
    %v74 = vmul.f32 %v57, %v72
    %v75 = vmul.f32 %v64, %v72
    %v76 = vmul.f32 %v71, %v72
    %v81 = vcombine.low %v73, %v74
    %v82 = vcombine.low %v75, %v76
    %v85 = vsub.f32 %v35, %v81
    %v86 = vsub.f32 %v36, %v82
    %v87 = vmul.f32 %v85, %v85
    %v88 = vmul.f32 %v86, %v86
    %v91 = vcombine.high %v87, %v87
    %v92 = vcombine.high %v88, %v88
    %v95 = vsel %vm43, %v87, 0.0
    %v96 = vrot.slane %v95, 4
    %v97 = vadd.f32 %v95, %v96
    %v98 = vrot.slane %v97, 2
    %v99 = vadd.f32 %v97, %v98
    %v100 = vrot.slane %v99, 1
    %v101 = vadd.f32 %v99, %v100
    %v102 = vsel %vm43, %v91, 0.0
    %v103 = vrot.slane %v102, 4
    %v104 = vadd.f32 %v102, %v103
    %v105 = vrot.slane %v104, 2
    %v106 = vadd.f32 %v104, %v105
    %v107 = vrot.slane %v106, 1
    %v108 = vadd.f32 %v106, %v107
    %v109 = vsel %vm43, %v88, 0.0
    %v110 = vrot.slane %v109, 4
    %v111 = vadd.f32 %v109, %v110
    %v112 = vrot.slane %v111, 2
    %v113 = vadd.f32 %v111, %v112
    %v114 = vrot.slane %v113, 1
    %v115 = vadd.f32 %v113, %v114
    %v116 = vsel %vm43, %v92, 0.0
    %v117 = vrot.slane %v116, 4
    %v118 = vadd.f32 %v116, %v117
    %v119 = vrot.slane %v118, 2
    %v120 = vadd.f32 %v118, %v119
    %v121 = vrot.slane %v120, 1
    %v122 = vadd.f32 %v120, %v121
    %v123 = vmul.f32 %v101, %v72
    %v124 = vmul.f32 %v108, %v72
    %v125 = vmul.f32 %v115, %v72
    %v126 = vmul.f32 %v122, %v72
    %v127 = vrsqrt.pop %v123
    %v128 = vmul.f32 %v123, %v127
    %vm129 = vcmp.eq.f32.partialorder %v123, inf
    %v130 = vsel %vm129, %v123, %v128
    %vm131 = vcmp.eq.f32.partialorder %v123, 0.0
    %v132 = vand.u32 %v123, 2147483648
    %v133 = vsel %vm131, %v132, %v130
    %v134 = vrsqrt.pop %v124
    %v135 = vmul.f32 %v124, %v134
    %vm136 = vcmp.eq.f32.partialorder %v124, inf
    %v137 = vsel %vm136, %v124, %v135
    %vm138 = vcmp.eq.f32.partialorder %v124, 0.0
    %v139 = vand.u32 %v124, 2147483648
    %v140 = vsel %vm138, %v139, %v137
    %v141 = vrsqrt.pop %v125
    %v142 = vmul.f32 %v125, %v141
    %vm143 = vcmp.eq.f32.partialorder %v125, inf
    %v144 = vsel %vm143, %v125, %v142
    %vm145 = vcmp.eq.f32.partialorder %v125, 0.0
    %v146 = vand.u32 %v125, 2147483648
    %v147 = vsel %vm145, %v146, %v144
    %v148 = vrsqrt.pop %v126
    %v149 = vmul.f32 %v126, %v148
    %vm150 = vcmp.eq.f32.partialorder %v126, inf
    %v151 = vsel %vm150, %v126, %v149
    %vm152 = vcmp.eq.f32.partialorder %v126, 0.0
    %v153 = vand.u32 %v126, 2147483648
    %v154 = vsel %vm152, %v153, %v151
    %v155 = vadd.f32 %v133, 1e-05
    %v156 = vadd.f32 %v140, 1e-05
    %v157 = vadd.f32 %v147, 1e-05
    %v158 = vadd.f32 %v154, 1e-05
    %v159 = vrcp.pop %v155
    %v160 = vrcp.pop %v156
    %v161 = vrcp.pop %v157
    %v162 = vrcp.pop %v158
    %v163 = vld [vmem:[%s1] sm:$0xf]
    %v164 = vld [vmem:[%s2] sm:$0xf]
    %v169 = vcombine.low %v159, %v160
    %v170 = vcombine.low %v161, %v162
    %v173 = vmul.f32 %v85, %v169
    %v174 = vmul.f32 %v86, %v170
    %176 = vset.pattern.permute.xlu0 0
    %177 = vperm.xlu0 %176, %v163
    %v178 = vpop.permute.xlu0 %177
    %v180 = vunpack.c.l.s4 839922192
    %v181 = vunpack.c.0.s8 %v180
    %v182 = vlaneseq
    %v183 = vshrl.u32 %v182, 7
    %v184 = vsub.s32 %v181, %v183
    %v185 = vrot.slane %v178, %v184
    %v187 = vmul.f32 %v173, %v185
    %v188 = vmul.f32 %v174, %v185
    %190 = vset.pattern.permute.xlu0 0
    %191 = vperm.xlu0 %190, %v164
    %v192 = vpop.permute.xlu0 %191
    %v194 = vunpack.c.l.s4 839922192
    %v195 = vunpack.c.0.s8 %v194
    %v196 = vlaneseq
    %v197 = vshrl.u32 %v196, 7
    %v198 = vsub.s32 %v195, %v197
    %v199 = vrot.slane %v192, %v198
    %v201 = vadd.f32 %v187, %v199
    %v202 = vadd.f32 %v188, %v199
    %v203 = vld [vmem:[%s4] sm:$0xf]
    %v204 = vld [vmem:[%s3] sm:$0xf]
    %206 = vset.pattern.permute.xlu0 0
    %207 = vperm.xlu0 %206, %v204
    %v208 = vpop.permute.xlu0 %207
    %v212 = vlaneseq
    %v213 = vshrl.u32 %v212, 7
    %v214 = vsub.s32 0, %v213
    %v215 = vrot.slane %v201, %v214
    %v216 = vlaneseq
    %v217 = vshrl.u32 %v216, 7
    %v218 = vsub.s32 4, %v217
    %v219 = vrot.slane %v201, %v218
    %v220 = vlaneseq
    %v221 = vshrl.u32 %v220, 7
    %v222 = vsub.s32 0, %v221
    %v223 = vrot.slane %v202, %v222
    %v224 = vlaneseq
    %v225 = vshrl.u32 %v224, 7
    %v226 = vsub.s32 4, %v225
    %v227 = vrot.slane %v202, %v226
    %v232 = vlaneseq
    %v233 = vshrl.u32 %v232, 7
    %v234 = vsub.s32 0, %v233
    %v235 = vrot.slane %v215, %v234
    %v236 = vlaneseq
    %v237 = vshrl.u32 %v236, 7
    %v238 = vsub.s32 0, %v237
    %v239 = vrot.slane %v219, %v238
    %v240 = vlaneseq
    %v241 = vshrl.u32 %v240, 7
    %v242 = vsub.s32 0, %v241
    %v243 = vrot.slane %v223, %v242
    %v244 = vlaneseq
    %v245 = vshrl.u32 %v244, 7
    %v246 = vsub.s32 0, %v245
    %v247 = vrot.slane %v227, %v246
    %v248 = vmul.f32 %v208, %v235
    %v249 = vmul.f32 %v208, %v239
    %v250 = vmul.f32 %v208, %v243
    %v251 = vmul.f32 %v208, %v247
    %253 = vset.pattern.permute.xlu0 0
    %254 = vperm.xlu0 %253, %v203
    %v255 = vpop.permute.xlu0 %254
    %v257 = vadd.f32 %v255, %v248
    %v258 = vadd.f32 %v255, %v249
    %v259 = vadd.f32 %v255, %v250
    %v260 = vadd.f32 %v255, %v251
    %261 = vset.pattern.permute.xlu0 1
    %262 = vperm.xlu0 %261, %v204
    %v263 = vpop.permute.xlu0 %262
    %v265 = vlaneseq
    %v266 = vshrl.u32 %v265, 7
    %v267 = vsub.s32 1, %v266
    %v268 = vrot.slane %v201, %v267
    %v269 = vlaneseq
    %v270 = vshrl.u32 %v269, 7
    %v271 = vsub.s32 5, %v270
    %v272 = vrot.slane %v201, %v271
    %v273 = vlaneseq
    %v274 = vshrl.u32 %v273, 7
    %v275 = vsub.s32 1, %v274
    %v276 = vrot.slane %v202, %v275
    %v277 = vlaneseq
    %v278 = vshrl.u32 %v277, 7
    %v279 = vsub.s32 5, %v278
    %v280 = vrot.slane %v202, %v279
    %v285 = vlaneseq
    %v286 = vshrl.u32 %v285, 7
    %v287 = vsub.s32 1, %v286
    %v288 = vrot.slane %v268, %v287
    %v289 = vlaneseq
    %v290 = vshrl.u32 %v289, 7
    %v291 = vsub.s32 1, %v290
    %v292 = vrot.slane %v272, %v291
    %v293 = vlaneseq
    %v294 = vshrl.u32 %v293, 7
    %v295 = vsub.s32 1, %v294
    %v296 = vrot.slane %v276, %v295
    %v297 = vlaneseq
    %v298 = vshrl.u32 %v297, 7
    %v299 = vsub.s32 1, %v298
    %v300 = vrot.slane %v280, %v299
    %v301 = vmul.f32 %v263, %v288
    %v302 = vmul.f32 %v263, %v292
    %v303 = vmul.f32 %v263, %v296
    %v304 = vmul.f32 %v263, %v300
    %v305 = vadd.f32 %v257, %v301
    %v306 = vadd.f32 %v258, %v302
    %v307 = vadd.f32 %v259, %v303
    %v308 = vadd.f32 %v260, %v304
    %309 = vset.pattern.permute.xlu0 2
    %310 = vperm.xlu0 %309, %v204
    %v311 = vpop.permute.xlu0 %310
    %v313 = vlaneseq
    %v314 = vshrl.u32 %v313, 7
    %v315 = vsub.s32 2, %v314
    %v316 = vrot.slane %v201, %v315
    %v317 = vlaneseq
    %v318 = vshrl.u32 %v317, 7
    %v319 = vsub.s32 6, %v318
    %v320 = vrot.slane %v201, %v319
    %v321 = vlaneseq
    %v322 = vshrl.u32 %v321, 7
    %v323 = vsub.s32 2, %v322
    %v324 = vrot.slane %v202, %v323
    %v325 = vlaneseq
    %v326 = vshrl.u32 %v325, 7
    %v327 = vsub.s32 6, %v326
    %v328 = vrot.slane %v202, %v327
    %v333 = vlaneseq
    %v334 = vshrl.u32 %v333, 7
    %v335 = vsub.s32 2, %v334
    %v336 = vrot.slane %v316, %v335
    %v337 = vlaneseq
    %v338 = vshrl.u32 %v337, 7
    %v339 = vsub.s32 2, %v338
    %v340 = vrot.slane %v320, %v339
    %v341 = vlaneseq
    %v342 = vshrl.u32 %v341, 7
    %v343 = vsub.s32 2, %v342
    %v344 = vrot.slane %v324, %v343
    %v345 = vlaneseq
    %v346 = vshrl.u32 %v345, 7
    %v347 = vsub.s32 2, %v346
    %v348 = vrot.slane %v328, %v347
    %v349 = vmul.f32 %v311, %v336
    %v350 = vmul.f32 %v311, %v340
    %v351 = vmul.f32 %v311, %v344
    %v352 = vmul.f32 %v311, %v348
    %v353 = vadd.f32 %v305, %v349
    %v354 = vadd.f32 %v306, %v350
    %v355 = vadd.f32 %v307, %v351
    %v356 = vadd.f32 %v308, %v352
    %357 = vset.pattern.permute.xlu0 3
    %358 = vperm.xlu0 %357, %v204
    %v359 = vpop.permute.xlu0 %358
    %v361 = vlaneseq
    %v362 = vshrl.u32 %v361, 7
    %v363 = vsub.s32 3, %v362
    %v364 = vrot.slane %v201, %v363
    %v365 = vlaneseq
    %v366 = vshrl.u32 %v365, 7
    %v367 = vsub.s32 7, %v366
    %v368 = vrot.slane %v201, %v367
    %v369 = vlaneseq
    %v370 = vshrl.u32 %v369, 7
    %v371 = vsub.s32 3, %v370
    %v372 = vrot.slane %v202, %v371
    %v373 = vlaneseq
    %v374 = vshrl.u32 %v373, 7
    %v375 = vsub.s32 7, %v374
    %v376 = vrot.slane %v202, %v375
    %v381 = vlaneseq
    %v382 = vshrl.u32 %v381, 7
    %v383 = vsub.s32 3, %v382
    %v384 = vrot.slane %v364, %v383
    %v385 = vlaneseq
    %v386 = vshrl.u32 %v385, 7
    %v387 = vsub.s32 3, %v386
    %v388 = vrot.slane %v368, %v387
    %v389 = vlaneseq
    %v390 = vshrl.u32 %v389, 7
    %v391 = vsub.s32 3, %v390
    %v392 = vrot.slane %v372, %v391
    %v393 = vlaneseq
    %v394 = vshrl.u32 %v393, 7
    %v395 = vsub.s32 3, %v394
    %v396 = vrot.slane %v376, %v395
    %v397 = vmul.f32 %v359, %v384
    %v398 = vmul.f32 %v359, %v388
    %v399 = vmul.f32 %v359, %v392
    %v400 = vmul.f32 %v359, %v396
    %v401 = vadd.f32 %v353, %v397
    %v402 = vadd.f32 %v354, %v398
    %v403 = vadd.f32 %v355, %v399
    %v404 = vadd.f32 %v356, %v400
    %v409 = vcombine.low %v401, %v402
    %v410 = vcombine.low %v403, %v404
    %413 = vst [vmem:[#allocation5] sm:$0xff] %v409
    %414 = vst [vmem:[#allocation5 + $0x8] sm:$0xff] %v410
    // Predicated region
    $region26: #{tpu_custom_call.1} parent=1 // pred_check
      _
    $region27: #{tpu_custom_call.1} parent=1 // pred_check_branch
      %416 = sbr.rel (0) target = $region29
    $region28: #{tpu_custom_call.1} parent=1 // pred_region
      %s418 = ssub.s32 256, 256
      %419 = vsyncadd [#allocation4], %s418
      %s420 = sshll.u32 [#allocation5], 4
      %s421 = int_to_ptr.vmem [resolvable:$true] %s420
      %426 = dma.vmem_to_hbm [thread:$0]  %s421, 256, %s5, [#allocation4], 128, 128, 8
    $region29: #{tpu_custom_call.1} parent=1 // pred_fallthru
      _
    // Predicated region
    $region30: #{tpu_custom_call.1} parent=1 // pred_check
      _
    $region31: #{tpu_custom_call.1} parent=1 // pred_check_branch
      %428 = sbr.rel (0) target = $region33
    $region32: #{tpu_custom_call.1} parent=1 // pred_region
      %429 = dma.done [#allocation4], 256
    $region33: #{tpu_custom_call.1} parent=1 // pred_fallthru
      _
    %430 = vsyncpa [#allocation3], 1
    %431 = vsyncpa [#allocation4], 1

</llo_original>
